<compile_context>
chip_gen: v5e
topology: v5e:2x2
jax: 0.10.0
libtpu: 0.0.40
codegen_flags: <defaults>
</compile_context>

<pallas_src>
import functools

import jax
import jax.numpy as jnp
from jax import lax
from jax.experimental import pallas as pl
from jax.experimental.pallas import tpu as pltpu

MARGIN = 2.0
EPS = 1e-8  # torch F.cosine_similarity default eps

# Review feedback: the old 256-row cap made tiles far too small to amortize the
# ~0.35 us per-grid-step pipeline overhead; let tiles grow and bound them by VMEM.
MAX_TILE_B = 2048


def _round_up(x, m):
    return (x + m - 1) // m * m


def _vmem_config():
    """Generation-aware VMEM sizing.

    v5e / v6e have 128 MiB physical VMEM -> raise the scoped limit to 64 MiB and give
    the tile chooser a ~44 MiB budget.  v7x has only 64 MiB physical (32 MiB scoped
    default) -> keep a conservative 32 MiB limit / 16 MiB budget.
    Returns (vmem_limit_bytes, tile_vmem_budget).
    """
    try:
        cap = pltpu.get_tpu_info().vmem_capacity_bytes
    except Exception:  # non-TPU / interpret fallback: use the smaller (v7x-safe) numbers
        cap = 64 * 1024 * 1024
    if cap >= 100 * 1024 * 1024:
        return 64 * 1024 * 1024, 44 * 1024 * 1024
    return 32 * 1024 * 1024, 16 * 1024 * 1024


def _choose_tile_b(B, D, itemsize, tile_budget):
    # Per-row VMEM footprint: double-buffered input pair (2 arrays x 2 buffers) plus
    # headroom for f32 in-kernel intermediates (casts / elementwise products).
    bytes_per_row = 4 * D * itemsize + 4 * D * 4
    tb = tile_budget // max(bytes_per_row, 1)
    tb = max(8, min(MAX_TILE_B, tb))
    tb = (tb // 8) * 8                        # multiple of 8 sublanes
    if B > 8:
        # Keep at least 2 grid steps so dimension_semantics=("parallel",) can still
        # shard the grid across both TensorCores on v7x.
        tb = min(tb, _round_up(pl.cdiv(B, 2), 8))
    tb = min(tb, _round_up(B, 8))             # no point tiling past the batch
    return max(tb, 8)


def _contrastive_loss_kernel(phi_i_ref, phi_j_ref, l_ref, out_ref, *, true_b, tile_b):
    xi = phi_i_ref[...].astype(jnp.float32)          # (TILE_B, D)
    xj = phi_j_ref[...].astype(jnp.float32)          # (TILE_B, D)
    lab = l_ref[...].astype(jnp.float32)             # (TILE_B, 1)

    # TODO(synk): for D < 128 only D/128 of each vreg lane is live and the three
    # row-reductions below are XLU cross-lane reduces; folding k=128//D rows into the
    # lane axis (or reducing via a ones-matrix matmul on the idle MXU) would help, but
    # the wrapper-side reshape costs an extra HBM pass / re-introduces padding and the
    # f32 multi-pass MXU route is not a clear win over the XLU here, so it is deferred
    # pending profiling.
    dot = jnp.sum(xi * xj, axis=-1, keepdims=True)   # (TILE_B, 1)
    ni2 = jnp.sum(xi * xi, axis=-1, keepdims=True)
    nj2 = jnp.sum(xj * xj, axis=-1, keepdims=True)

    # torch cosine_similarity clamps each norm separately:
    #   d = dot / (max(||xi||, eps) * max(||xj||, eps))
    #     = dot * rsqrt(max(ni2, eps^2) * max(nj2, eps^2))   -> single EUP rsqrt
    # NOTE: multiplying the squared norms can overflow to inf earlier than torch's
    # (clamped-norm * clamped-norm) formulation for features with |x| ~ 1e19; harmless
    # for typical embedding magnitudes.
    denom2 = jnp.maximum(ni2, EPS * EPS) * jnp.maximum(nj2, EPS * EPS)
    d = dot * lax.rsqrt(denom2)

    hinge = jnp.maximum(MARGIN - d, 0.0)
    per_row = 0.5 * (1.0 - lab) * d * d + 0.5 * lab * hinge * hinge   # (TILE_B, 1)

    # Ragged last tile: rows past the true batch size hold undefined data.  Mask with
    # a select (NOT a 0/1 multiply) so garbage-row NaN/Inf cannot propagate.
    row = pl.program_id(0) * tile_b + lax.broadcasted_iota(jnp.int32, per_row.shape, 0)
    per_row = jnp.where(row < true_b, per_row, 0.0)

    partial = jnp.sum(per_row)
    # Lane-dense (unmasked) store of this tile's partial sum; wrapper reads [:, 0, 0].
    out_ref[...] = jnp.full(out_ref.shape, partial, dtype=jnp.float32)


def contrastive_loss(phi_i, phi_j, l_ij, margin=MARGIN):
    """Mean contrastive loss with cosine similarity (PyTorch ContrastiveLoss forward)."""
    assert margin == MARGIN, "margin is baked into the kernel as a compile-time constant"
    B, D = phi_i.shape
    itemsize = jnp.dtype(phi_i.dtype).itemsize

    vmem_limit, tile_budget = _vmem_config()
    tile_b = _choose_tile_b(B, D, itemsize, tile_budget)
    num_tiles = pl.cdiv(B, tile_b)

    # No jnp.pad of the (B, D) inputs: the ragged last tile is masked in-kernel, which
    # avoids a full extra HBM read+write pass on this bandwidth-bound kernel.
    l2d = l_ij.reshape(B, 1).astype(jnp.float32)

    kernel = functools.partial(_contrastive_loss_kernel, true_b=B, tile_b=tile_b)

    bytes_accessed = 2 * B * D * itemsize + B * 4 + num_tiles * 8 * 128 * 4
    out = pl.pallas_call(
        kernel,
        out_shape=jax.ShapeDtypeStruct((num_tiles, 8, 128), jnp.float32),
        grid=(num_tiles,),
        in_specs=[
            pl.BlockSpec((tile_b, D), lambda i: (i, 0)),
            pl.BlockSpec((tile_b, D), lambda i: (i, 0)),
            pl.BlockSpec((tile_b, 1), lambda i: (i, 0)),
        ],
        out_specs=pl.BlockSpec((1, 8, 128), lambda i: (i, 0, 0)),
        compiler_params=pltpu.CompilerParams(
            dimension_semantics=("parallel",),          # shard tiles across TCs on v7x
            vmem_limit_bytes=vmem_limit,
        ),
        cost_estimate=pl.CostEstimate(
            flops=7 * B * D,
            transcendentals=B,
            bytes_accessed=bytes_accessed,
        ),
    )(phi_i, phi_j, l2d)

    # One partial per tile lives at lane 0 of each block; divide by the TRUE batch size.
    return jnp.sum(out[:, 0, 0]) / jnp.float32(B)


def _reference(phi_i, phi_j, l_ij, margin=MARGIN):
    xi = phi_i.astype(jnp.float32)
    xj = phi_j.astype(jnp.float32)
    lab = l_ij.astype(jnp.float32)
    dot = jnp.sum(xi * xj, axis=-1)
    ni = jnp.maximum(jnp.linalg.norm(xi, axis=-1), EPS)   # torch clamps each norm separately
    nj = jnp.maximum(jnp.linalg.norm(xj, axis=-1), EPS)
    d = dot / (ni * nj)
    l = 0.5 * (1.0 - lab) * d**2 + 0.5 * lab * jnp.maximum(margin - d, 0.0) ** 2
    return jnp.mean(l)


if __name__ == "__main__":
    key = jax.random.PRNGKey(0)
    k1, k2, k3 = jax.random.split(key, 3)
    B, D = 8, 32  # small shapes: batch of embedding pairs with hidden dim 32
    phi_i = jax.random.normal(k1, (B, D), dtype=jnp.float32)
    phi_j = jax.random.normal(k2, (B, D), dtype=jnp.float32)
    l_ij = jax.random.bernoulli(k3, 0.5, (B,)).astype(jnp.int32)  # 0 = similar, 1 = dissimilar

    loss = contrastive_loss(phi_i, phi_j, l_ij)
    jax.block_until_ready(loss)

    ref = _reference(phi_i, phi_j, l_ij)
    assert jnp.allclose(loss, ref, atol=1e-5, rtol=1e-5), (loss, ref)

    # also exercise a batch that is not a multiple of the tile height
    # (multi-tile grid + ragged last tile masked in-kernel, no wrapper padding)
    B2 = 20
    k4, k5, k6 = jax.random.split(key, 3)
    pi2 = jax.random.normal(k4, (B2, D), dtype=jnp.float32)
    pj2 = jax.random.normal(k5, (B2, D), dtype=jnp.float32)
    l2 = jax.random.bernoulli(k6, 0.5, (B2,)).astype(jnp.int32)
    loss2 = contrastive_loss(pi2, pj2, l2)
    jax.block_until_ready(loss2)
    assert jnp.allclose(loss2, _reference(pi2, pj2, l2), atol=1e-5, rtol=1e-5), loss2

    print("KERNEL_OK")
</pallas_src>

<mosaic_0001>
module attributes {stable_mosaic.version = 11 : i64} {
  func.func @_contrastive_loss_kernel(%arg0: i32, %arg1: memref<8x32xf32, #tpu.memory_space<vmem>>, %arg2: memref<8x32xf32, #tpu.memory_space<vmem>>, %arg3: memref<8x1xf32, #tpu.memory_space<vmem>>, %arg4: memref<1x8x128xf32, #tpu.memory_space<vmem>>) attributes {dimension_semantics = [#tpu.dimension_semantics<parallel>], iteration_bounds = array<i64: 1>, scalar_prefetch = 0 : i64, scratch_operands = 0 : i64, tpu.core_type = #tpu.core_type<tc>, window_params = [{transform_indices = @transform_0, window_bounds = array<i64: 8, 32>}, {transform_indices = @transform_1, window_bounds = array<i64: 8, 32>}, {transform_indices = @transform_2, window_bounds = array<i64: 8, 1>}, {transform_indices = @transform_3, window_bounds = array<i64: 1, 8, 128>}]} {
    %c0 = arith.constant 0 : index
    %c0_0 = arith.constant 0 : index
    %0 = vector.load %arg1[%c0, %c0_0] : memref<8x32xf32, #tpu.memory_space<vmem>>, vector<8x32xf32>
    %c0_1 = arith.constant 0 : index
    %c0_2 = arith.constant 0 : index
    %1 = vector.load %arg2[%c0_1, %c0_2] : memref<8x32xf32, #tpu.memory_space<vmem>>, vector<8x32xf32>
    %c0_3 = arith.constant 0 : index
    %c0_4 = arith.constant 0 : index
    %2 = vector.load %arg3[%c0_3, %c0_4] : memref<8x1xf32, #tpu.memory_space<vmem>>, vector<8x1xf32>
    %3 = arith.mulf %0, %1 : vector<8x32xf32>
    %cst = arith.constant dense<0.000000e+00> : vector<8xf32>
    %4 = vector.multi_reduction <add>, %3, %cst [1] : vector<8x32xf32> to vector<8xf32>
    %5 = vector.shape_cast %4 : vector<8xf32> to vector<8x1xf32>
    %6 = arith.mulf %0, %0 : vector<8x32xf32>
    %cst_5 = arith.constant dense<0.000000e+00> : vector<8xf32>
    %7 = vector.multi_reduction <add>, %6, %cst_5 [1] : vector<8x32xf32> to vector<8xf32>
    %8 = vector.shape_cast %7 : vector<8xf32> to vector<8x1xf32>
    %9 = arith.mulf %1, %1 : vector<8x32xf32>
    %cst_6 = arith.constant dense<0.000000e+00> : vector<8xf32>
    %10 = vector.multi_reduction <add>, %9, %cst_6 [1] : vector<8x32xf32> to vector<8xf32>
    %11 = vector.shape_cast %10 : vector<8xf32> to vector<8x1xf32>
    %cst_7 = arith.constant 1.000000e-16 : f32
    %12 = vector.broadcast %cst_7 : f32 to vector<8x1xf32>
    %13 = arith.maximumf %8, %12 : vector<8x1xf32>
    %cst_8 = arith.constant 1.000000e-16 : f32
    %14 = vector.broadcast %cst_8 : f32 to vector<8x1xf32>
    %15 = arith.maximumf %11, %14 : vector<8x1xf32>
    %16 = arith.mulf %13, %15 : vector<8x1xf32>
    %17 = math.rsqrt %16 : vector<8x1xf32>
    %18 = arith.mulf %5, %17 : vector<8x1xf32>
    %cst_9 = arith.constant 2.000000e+00 : f32
    %19 = vector.broadcast %cst_9 : f32 to vector<8x1xf32>
    %20 = arith.subf %19, %18 : vector<8x1xf32>
    %cst_10 = arith.constant 0.000000e+00 : f32
    %21 = vector.broadcast %cst_10 : f32 to vector<8x1xf32>
    %22 = arith.maximumf %20, %21 : vector<8x1xf32>
    %cst_11 = arith.constant 1.000000e+00 : f32
    %23 = vector.broadcast %cst_11 : f32 to vector<8x1xf32>
    %24 = arith.subf %23, %2 : vector<8x1xf32>
    %cst_12 = arith.constant 5.000000e-01 : f32
    %25 = vector.broadcast %cst_12 : f32 to vector<8x1xf32>
    %26 = arith.mulf %25, %24 : vector<8x1xf32>
    %27 = arith.mulf %26, %18 : vector<8x1xf32>
    %28 = arith.mulf %27, %18 : vector<8x1xf32>
    %cst_13 = arith.constant 5.000000e-01 : f32
    %29 = vector.broadcast %cst_13 : f32 to vector<8x1xf32>
    %30 = arith.mulf %29, %2 : vector<8x1xf32>
    %31 = arith.mulf %30, %22 : vector<8x1xf32>
    %32 = arith.mulf %31, %22 : vector<8x1xf32>
    %33 = arith.addf %28, %32 : vector<8x1xf32>
    %c8_i32 = arith.constant 8 : i32
    %34 = arith.muli %arg0, %c8_i32 : i32
    %35 = tpu.iota {dimensions = array<i32: 0>} : vector<8x1xi32>
    %36 = vector.broadcast %34 : i32 to vector<8x1xi32>
    %37 = arith.addi %36, %35 : vector<8x1xi32>
    %c8_i32_14 = arith.constant 8 : i32
    %38 = vector.broadcast %c8_i32_14 : i32 to vector<8x1xi32>
    %39 = arith.cmpi slt, %37, %38 : vector<8x1xi32>
    %cst_15 = arith.constant 0.000000e+00 : f32
    %40 = vector.broadcast %cst_15 : f32 to vector<8x1xf32>
    %41 = arith.select %39, %33, %40 : vector<8x1xi1>, vector<8x1xf32>
    %42 = vector.shape_cast %41 : vector<8x1xf32> to vector<1x8x1xf32>
    %cst_16 = arith.constant dense<0.000000e+00> : vector<1xf32>
    %43 = vector.multi_reduction <add>, %42, %cst_16 [1, 2] : vector<1x8x1xf32> to vector<1xf32>
    %44 = vector.shape_cast %43 : vector<1xf32> to vector<1x1x1xf32>
    %45 = vector.extract %44[0, 0, 0] : f32 from vector<1x1x1xf32>
    %46 = vector.broadcast %45 : f32 to vector<1x8x128xf32>
    %c0_17 = arith.constant 0 : index
    %c0_18 = arith.constant 0 : index
    %c0_19 = arith.constant 0 : index
    %47 = vector.load %arg4[%c0_17, %c0_18, %c0_19] : memref<1x8x128xf32, #tpu.memory_space<vmem>>, vector<1x8x128xf32>
    tpu.vector_store %arg4[%c0_17, %c0_18, %c0_19], %46 {strides = array<i32>} : memref<1x8x128xf32, #tpu.memory_space<vmem>>, vector<1x8x128xf32>,
    return
  }
  func.func @transform_0(%arg0: i32) -> (i32, i32) {
    %c0_i32 = arith.constant 0 : i32
    %c0_i32_0 = arith.constant 0 : i32
    return %arg0, %c0_i32 : i32, i32
  }
  func.func @transform_1(%arg0: i32) -> (i32, i32) {
    %c0_i32 = arith.constant 0 : i32
    %c0_i32_0 = arith.constant 0 : i32
    return %arg0, %c0_i32 : i32, i32
  }
  func.func @transform_2(%arg0: i32) -> (i32, i32) {
    %c0_i32 = arith.constant 0 : i32
    %c0_i32_0 = arith.constant 0 : i32
    return %arg0, %c0_i32 : i32, i32
  }
  func.func @transform_3(%arg0: i32) -> (i32, i32, i32) {
    %c0_i32 = arith.constant 0 : i32
    %c0_i32_0 = arith.constant 0 : i32
    %c0_i32_1 = arith.constant 0 : i32
    return %arg0, %c0_i32, %c0_i32_0 : i32, i32, i32
  }
}

</mosaic_0001>

<llo_original>
// kernel: tpu_custom_call.1
$region0: #{tpu_custom_call.1}
  #allocation0 [shape = 'u32[]', space=smem, size = 0x4, offset = 0x4, fixed_abs, tag = 'smem constant byte address 0x4 - core index']
  #allocation1 [shape = 'u32[72,128]{1,0:T(1,128)}', space=vmem, size = 0x9000, scoped, tag = 'internal scratch']
  %s0 = inlined_call_operand.vmem [shape: f32[8,32], index: 0, kind: input, shape index: {}]
  %s1 = inlined_call_operand.hbm [shape: f32[8,32], index: 1, kind: input, shape index: {}]
  %s2 = inlined_call_operand.vmem [shape: f32[8,1], index: 2, kind: input, shape index: {}]
  %s3 = inlined_call_operand.hbm [shape: f32[1,8,128], index: 3, kind: output, shape index: {}]
  %s4 = sld [smem:[#allocation0]]
  $region26: #{tpu_custom_call.1} parent=0
    _
  %s6 = ssub.s32 1, %s4
  %s7 = scalar_select 0, %s6, %s4
  $region1: #{tpu_custom_call.1} parent=0
    #allocation2 [shape = 'u8[4096]{0}', space=vmem, size = 0x1000, scoped, tag = 'input window, operand 1, single buffered']
    #allocation3 [shape = 's32[1]{0}', space=sflag, size = 0x4, scoped, tag = 'scoped memory for tpu_custom_call.1']
    #allocation4 [shape = 's32[1]{0}', space=sflag, size = 0x4, scoped, tag = 'scoped memory for tpu_custom_call.1']
    #allocation5 [shape = 'u8[4096]{0}', space=vmem, size = 0x1000, scoped, tag = 'output window, operand 0, single buffered']
    %8 = vsyncpa [#allocation3], 0
    %9 = vsyncpa [#allocation4], 0
    // Predicated region
    $region2: #{tpu_custom_call.1} parent=1 // pred_check
      _
    $region3: #{tpu_custom_call.1} parent=1 // pred_check_branch
      %11 = sbr.rel (0) target = $region5
    $region4: #{tpu_custom_call.1} parent=1 // pred_region
      _
    $region5: #{tpu_custom_call.1} parent=1 // pred_fallthru
      _
    // Predicated region
    $region6: #{tpu_custom_call.1} parent=1 // pred_check
      _
    $region7: #{tpu_custom_call.1} parent=1 // pred_check_branch
      %13 = sbr.rel (0) target = $region9
    $region8: #{tpu_custom_call.1} parent=1 // pred_region
      %15 = vsyncadd [#allocation3], 0
      %s17 = sshll.u32 %s1, 4
      %s18 = int_to_ptr.hbm [resolvable:$true] %s17
      %s19 = sshll.u32 [#allocation2], 4
      %s20 = int_to_ptr.vmem [resolvable:$true] %s19
      %22 = dma.hbm_to_vmem [thread:$0]  %s18, 128, %s20, [#allocation3]
    $region9: #{tpu_custom_call.1} parent=1 // pred_fallthru
      _
    // Predicated region
    $region10: #{tpu_custom_call.1} parent=1 // pred_check
      _
    $region11: #{tpu_custom_call.1} parent=1 // pred_check_branch
      %24 = sbr.rel (0) target = $region13
    $region12: #{tpu_custom_call.1} parent=1 // pred_region
      _
    $region13: #{tpu_custom_call.1} parent=1 // pred_fallthru
      _
    // Predicated region
    $region14: #{tpu_custom_call.1} parent=1 // pred_check
      _
    $region15: #{tpu_custom_call.1} parent=1 // pred_check_branch
      %26 = sbr.rel (0) target = $region17
    $region16: #{tpu_custom_call.1} parent=1 // pred_region
      %28 = dma.done [#allocation3], 128
    $region17: #{tpu_custom_call.1} parent=1 // pred_fallthru
      _
    %v29 = vld [vmem:[%s0] sm:$0xff]
    %v30 = vld [vmem:[#allocation2] sm:$0xff]
    %v31 = vld [vmem:[%s2] sm:$0xff]
    %v32 = vmul.f32 %v29, %v30
    %vm33 = vcmask 261120
    %v34 = vsel %vm33, %v32, 0.0
    %35 = vadd.xlane.f32.xlu0 %v34
    %v36 = vpop.xlane.xlu0 %35
    %v37 = vmul.f32 %v29, %v29
    %v38 = vsel %vm33, %v37, 0.0
    %39 = vadd.xlane.f32.xlu0 %v38
    %v40 = vpop.xlane.xlu0 %39
    %v41 = vmul.f32 %v30, %v30
    %v42 = vsel %vm33, %v41, 0.0
    %43 = vadd.xlane.f32.xlu0 %v42
    %v44 = vpop.xlane.xlu0 %43
    %v45 = vmax.f32 %v40, 1e-16
    %v46 = vmax.f32 %v44, 1e-16
    %v47 = vmul.f32 %v45, %v46
    %v48 = vrsqrt.pop %v47
    %v49 = vmul.f32 %v48, %v47
    %v50 = vmul.f32 %v49, %v48
    %v51 = vmul.f32 0.5, %v50
    %v52 = vsub.f32 1.5, %v51
    %v53 = vmul.f32 %v48, %v52
    %vm54 = vweird.f32 %v47
    %vm55 = vweird.f32 %v48
    %vm56 = vmor %vm54, %vm55
    %v57 = vsel %vm56, %v48, %v53
    %v58 = vmul.f32 %v36, %v57
    %v59 = vsub.f32 2.0, %v58
    %v60 = vmax.f32 %v59, 0.0
    %v61 = vsub.f32 1.0, %v31
    %v62 = vmul.f32 %v61, 0.5
    %v63 = vmul.f32 %v62, %v58
    %v64 = vmul.f32 %v63, %v58
    %v65 = vmul.f32 %v31, 0.5
    %v66 = vmul.f32 %v65, %v60
    %v67 = vmul.f32 %v66, %v60
    %v68 = vadd.f32 %v64, %v67
    %s69 = smul.u32 0, 8
    %v70 = vlaneseq
    %v71 = vshrl.u32 %v70, 7
    %v72 = vstv %s69
    %v73 = vadd.s32 %v72, %v71
    %vm74 = vcmp.lt.s32.totalorder %v73, 8
    %v75 = vsel %vm74, %v68, 0.0
    %vm76 = vcmask 7168
    %v77 = vsel %vm76, %v75, 0.0
    %78 = vadd.xlane.f32.xlu0 %v77
    %v79 = vpop.xlane.xlu0 %78
    %v80 = vrot.slane %v79, 4
    %v81 = vadd.f32 %v79, %v80
    %v82 = vrot.slane %v81, 2
    %v83 = vadd.f32 %v81, %v82
    %v84 = vrot.slane %v83, 1
    %v85 = vadd.f32 %v83, %v84
    %s86 = vtos %v85
    %v87 = vstv %s86
    %88 = vst [vmem:[#allocation5] sm:$0xff] %v87
    // Predicated region
    $region18: #{tpu_custom_call.1} parent=1 // pred_check
      _
    $region19: #{tpu_custom_call.1} parent=1 // pred_check_branch
      %90 = sbr.rel (0) target = $region21
    $region20: #{tpu_custom_call.1} parent=1 // pred_region
      %92 = vsyncadd [#allocation4], 0
      %s94 = sshll.u32 [#allocation5], 4
      %s95 = int_to_ptr.vmem [resolvable:$true] %s94
      %s96 = sshll.u32 %s3, 4
      %s97 = int_to_ptr.hbm [resolvable:$true] %s96
      %99 = dma.vmem_to_hbm [thread:$0]  %s95, 128, %s97, [#allocation4]
    $region21: #{tpu_custom_call.1} parent=1 // pred_fallthru
      _
    // Predicated region
    $region22: #{tpu_custom_call.1} parent=1 // pred_check
      _
    $region23: #{tpu_custom_call.1} parent=1 // pred_check_branch
      %101 = sbr.rel (0) target = $region25
    $region24: #{tpu_custom_call.1} parent=1 // pred_region
      %103 = dma.done [#allocation4], 128
    $region25: #{tpu_custom_call.1} parent=1 // pred_fallthru
      _
    %104 = vsyncpa [#allocation3], 1
    %105 = vsyncpa [#allocation4], 1

</llo_original>
